<compile_context>
chip_gen: v5e
topology: v5e:2x2
jax: 0.10.0
libtpu: 0.0.40
codegen_flags: <defaults>
</compile_context>

<pallas_src>
import jax
import jax.numpy as jnp
from jax.experimental import pallas as pl
from jax.experimental.pallas import tpu as pltpu


def lstm_step_decode_kernel(idx_ref, h0_ref, c0_ref, emb_ref, wg_ref, bg_ref,
                            wdec_ref, bdec_ref,
                            logits_ref, h1_ref, c1_ref):
    B, H = h0_ref.shape
    V = emb_ref.shape[0]

    # --- Embedding gather inside the kernel: one-hot @ table (MXU, exact). ---
    idx = idx_ref[...]                                         # (B, 1) int32
    iota_v = jax.lax.broadcasted_iota(jnp.int32, (B, V), 1)    # (B, V)
    onehot = (iota_v == idx).astype(jnp.bfloat16)              # (B, V)
    x_emb = jnp.dot(onehot, emb_ref[...],
                    preferred_element_type=jnp.float32)        # (B, E) f32

    h0 = h0_ref[...]                                           # (B, H) f32
    c0 = c0_ref[...]                                           # (B, H) f32

    # --- Fused gate matmul: [x, h] @ [W_ih^T ; W_hh^T] + (b_ih + b_hh). ---
    xh = jnp.concatenate([x_emb, h0], axis=-1)                 # (B, E+H) f32
    gates = (jnp.dot(xh.astype(jnp.bfloat16), wg_ref[...],
                     preferred_element_type=jnp.float32)
             + bg_ref[...])                                    # (B, 4H) f32

    # Gate elementwise math stays in f32 (no bf16 VPU/EUP on v5e).
    i_g = jax.nn.sigmoid(gates[:, 0 * H:1 * H])
    f_g = jax.nn.sigmoid(gates[:, 1 * H:2 * H])
    g_g = jnp.tanh(gates[:, 2 * H:3 * H])
    o_g = jax.nn.sigmoid(gates[:, 3 * H:4 * H])

    c1 = f_g * c0 + i_g * g_g
    h1 = o_g * jnp.tanh(c1)

    # --- Decoder: logits = h1 @ W_dec^T + b_dec. ---
    logits = (jnp.dot(h1.astype(jnp.bfloat16), wdec_ref[...],
                      preferred_element_type=jnp.float32)
              + bdec_ref[...])                                 # (B, V) f32

    logits_ref[...] = logits
    h1_ref[...] = h1
    c1_ref[...] = c1


def prepare_params(params):
    """One-time prep: pre-transpose / fuse / bf16-cast the kernel operands."""
    H = params["w_hh"].shape[1]
    V = params["w_dec"].shape[0]
    w_gates = jnp.concatenate([params["w_ih"].T, params["w_hh"].T], axis=0)   # (E+H, 4H)
    return {
        "emb_table": params["embedding"].astype(jnp.bfloat16),                # (V, E)
        "w_gates": w_gates.astype(jnp.bfloat16),                              # (E+H, 4H)
        "b_gates": (params["b_ih"] + params["b_hh"]).reshape(1, 4 * H).astype(jnp.float32),
        "w_dec": params["w_dec"].T.astype(jnp.bfloat16),                      # (H, V)
        "b_dec": params["b_dec"].reshape(1, V).astype(jnp.float32),           # (1, V)
    }


def net_forward(prepared, x_idx, hidden=None):
    """Mirrors Net.forward: x_idx is a 1-D int array of token ids (len = batch).

    Returns (logits (B, V), (h_n (1, B, H), c_n (1, B, H))).
    """
    B = x_idx.shape[0]
    H = prepared["w_dec"].shape[0]
    V = prepared["w_dec"].shape[1]

    if hidden is None:
        h0 = jnp.zeros((B, H), jnp.float32)
        c0 = jnp.zeros((B, H), jnp.float32)
    else:
        h0 = hidden[0].reshape(B, H).astype(jnp.float32)
        c0 = hidden[1].reshape(B, H).astype(jnp.float32)

    idx2d = x_idx.astype(jnp.int32).reshape(B, 1)

    vmem = pl.BlockSpec(memory_space=pltpu.MemorySpace.VMEM)
    logits, h1, c1 = pl.pallas_call(
        lstm_step_decode_kernel,
        out_shape=(jax.ShapeDtypeStruct((B, V), jnp.float32),
                   jax.ShapeDtypeStruct((B, H), jnp.float32),
                   jax.ShapeDtypeStruct((B, H), jnp.float32)),
        in_specs=[vmem] * 8,
        out_specs=(vmem, vmem, vmem),
        # h0 -> h1, c0 -> c1 written back in place (state buffers reused).
        input_output_aliases={1: 1, 2: 2},
    )(idx2d, h0, c0, prepared["emb_table"], prepared["w_gates"],
      prepared["b_gates"], prepared["w_dec"], prepared["b_dec"])

    return logits, (h1.reshape(1, B, H), c1.reshape(1, B, H))


def init_params(key, vocab_size, embed_dim, hidden_dim):
    """Deterministic synthetic parameters matching the PyTorch module's shapes."""
    ks = jax.random.split(key, 7)
    lstm_bound = 1.0 / jnp.sqrt(jnp.float32(hidden_dim))
    dec_bound = 1.0 / jnp.sqrt(jnp.float32(hidden_dim))
    u = lambda k, shape, b: jax.random.uniform(k, shape, jnp.float32, -b, b)
    return {
        "embedding": jax.random.normal(ks[0], (vocab_size, embed_dim), jnp.float32),
        "w_ih": u(ks[1], (4 * hidden_dim, embed_dim), lstm_bound),
        "w_hh": u(ks[2], (4 * hidden_dim, hidden_dim), lstm_bound),
        "b_ih": u(ks[3], (4 * hidden_dim,), lstm_bound),
        "b_hh": u(ks[4], (4 * hidden_dim,), lstm_bound),
        "w_dec": u(ks[5], (vocab_size, hidden_dim), dec_bound),
        "b_dec": u(ks[6], (vocab_size,), dec_bound),
    }


def net_forward_ref(params, x_idx, hidden=None):
    """Pure-JAX f32 reference (original module math) for correctness checking."""
    emb = params["embedding"][x_idx].astype(jnp.float32)
    B = x_idx.shape[0]
    H = params["w_hh"].shape[1]
    if hidden is None:
        h0 = jnp.zeros((B, H), jnp.float32)
        c0 = jnp.zeros((B, H), jnp.float32)
    else:
        h0, c0 = hidden[0].reshape(B, H), hidden[1].reshape(B, H)
    gates = (emb @ params["w_ih"].T + h0 @ params["w_hh"].T
             + params["b_ih"] + params["b_hh"])
    i_g = jax.nn.sigmoid(gates[:, 0 * H:1 * H])
    f_g = jax.nn.sigmoid(gates[:, 1 * H:2 * H])
    g_g = jnp.tanh(gates[:, 2 * H:3 * H])
    o_g = jax.nn.sigmoid(gates[:, 3 * H:4 * H])
    c1 = f_g * c0 + i_g * g_g
    h1 = o_g * jnp.tanh(c1)
    logits = h1 @ params["w_dec"].T + params["b_dec"]
    return logits, (h1.reshape(1, B, H), c1.reshape(1, B, H))


if __name__ == "__main__":
    # Small, deterministic shapes consistent with the module's forward.
    vocab_size, embed_dim, hidden_dim, batch = 128, 128, 128, 8

    key = jax.random.PRNGKey(0)
    pkey, xkey, x2key = jax.random.split(key, 3)
    params = init_params(pkey, vocab_size, embed_dim, hidden_dim)
    prepared = prepare_params(params)          # one-time, outside the hot path
    x_idx = jax.random.randint(xkey, (batch,), 0, vocab_size, dtype=jnp.int32)

    # Step 1: hidden=None (zero state).
    logits, (h_n, c_n) = net_forward(prepared, x_idx, hidden=None)
    jax.block_until_ready((logits, h_n, c_n))

    ref_logits, (ref_h, ref_c) = net_forward_ref(params, x_idx, hidden=None)
    assert logits.shape == (batch, vocab_size)
    assert h_n.shape == (1, batch, hidden_dim) and c_n.shape == (1, batch, hidden_dim)
    # bf16 weights -> loosened tolerances vs the pure-f32 reference.
    assert jnp.allclose(logits, ref_logits, atol=5e-2, rtol=5e-2)
    assert jnp.allclose(h_n, ref_h, atol=5e-2, rtol=5e-2)
    assert jnp.allclose(c_n, ref_c, atol=5e-2, rtol=5e-2)

    # Step 2: feed the returned hidden back in (exercises the aliased-state path).
    x2_idx = jax.random.randint(x2key, (batch,), 0, vocab_size, dtype=jnp.int32)
    ref2_logits, (ref2_h, ref2_c) = net_forward_ref(params, x2_idx, hidden=(h_n, c_n))
    logits2, (h_n2, c_n2) = net_forward(prepared, x2_idx, hidden=(h_n, c_n))
    jax.block_until_ready((logits2, h_n2, c_n2))
    assert jnp.allclose(logits2, ref2_logits, atol=5e-2, rtol=5e-2)
    assert jnp.allclose(h_n2, ref2_h, atol=5e-2, rtol=5e-2)
    assert jnp.allclose(c_n2, ref2_c, atol=5e-2, rtol=5e-2)

    print("KERNEL_OK")
</pallas_src>

<mosaic_0001>
module attributes {stable_mosaic.version = 11 : i64} {
  func.func @lstm_step_decode_kernel(%arg0: memref<8x1xi32, #tpu.memory_space<vmem>>, %arg1: memref<8x128xf32, #tpu.memory_space<vmem>>, %arg2: memref<8x128xf32, #tpu.memory_space<vmem>>, %arg3: memref<128x128xbf16, #tpu.memory_space<vmem>>, %arg4: memref<256x512xbf16, #tpu.memory_space<vmem>>, %arg5: memref<1x512xf32, #tpu.memory_space<vmem>>, %arg6: memref<128x128xbf16, #tpu.memory_space<vmem>>, %arg7: memref<1x128xf32, #tpu.memory_space<vmem>>, %arg8: memref<8x128xf32, #tpu.memory_space<vmem>>, %arg9: memref<8x128xf32, #tpu.memory_space<vmem>>, %arg10: memref<8x128xf32, #tpu.memory_space<vmem>>) attributes {dimension_semantics = [], scalar_prefetch = 0 : i64, scratch_operands = 0 : i64, tpu.core_type = #tpu.core_type<tc>} {
    %c0 = arith.constant 0 : index
    %c0_0 = arith.constant 0 : index
    %0 = vector.load %arg0[%c0, %c0_0] : memref<8x1xi32, #tpu.memory_space<vmem>>, vector<8x1xi32>
    %1 = tpu.iota {dimensions = array<i32: 1>} : vector<8x128xi32>
    %2 = vector.broadcast %0 : vector<8x1xi32> to vector<8x128xi32>
    %3 = arith.cmpi eq, %1, %2 : vector<8x128xi32>
    %4 = arith.extui %3 : vector<8x128xi1> to vector<8x128xi32>
    %5 = arith.sitofp %4 : vector<8x128xi32> to vector<8x128xf32>
    %6 = arith.truncf %5 : vector<8x128xf32> to vector<8x128xbf16>
    %c0_1 = arith.constant 0 : index
    %c0_2 = arith.constant 0 : index
    %7 = vector.load %arg3[%c0_1, %c0_2] : memref<128x128xbf16, #tpu.memory_space<vmem>>, vector<128x128xbf16>
    %cst = arith.constant dense<0.000000e+00> : vector<8x128xf32>
    %8 = tpu.matmul %6, %7, %cst {dimension_numbers = #tpu.dot_dimension_numbers<[1], [0], [0], [1], [0, 0, 1, 1], [], []>} : vector<8x128xbf16>, vector<128x128xbf16>, vector<8x128xf32> -> vector<8x128xf32>
    %c0_3 = arith.constant 0 : index
    %c0_4 = arith.constant 0 : index
    %9 = vector.load %arg1[%c0_3, %c0_4] : memref<8x128xf32, #tpu.memory_space<vmem>>, vector<8x128xf32>
    %c0_5 = arith.constant 0 : index
    %c0_6 = arith.constant 0 : index
    %10 = vector.load %arg2[%c0_5, %c0_6] : memref<8x128xf32, #tpu.memory_space<vmem>>, vector<8x128xf32>
    %11 = tpu.concatenate %8, %9 in 1 : vector<8x128xf32>, vector<8x128xf32> -> vector<8x256xf32>
    %12 = arith.truncf %11 : vector<8x256xf32> to vector<8x256xbf16>
    %c0_7 = arith.constant 0 : index
    %c0_8 = arith.constant 0 : index
    %13 = vector.load %arg4[%c0_7, %c0_8] : memref<256x512xbf16, #tpu.memory_space<vmem>>, vector<256x512xbf16>
    %cst_9 = arith.constant dense<0.000000e+00> : vector<8x512xf32>
    %14 = tpu.matmul %12, %13, %cst_9 {dimension_numbers = #tpu.dot_dimension_numbers<[1], [0], [0], [1], [0, 0, 1, 1], [], []>} : vector<8x256xbf16>, vector<256x512xbf16>, vector<8x512xf32> -> vector<8x512xf32>
    %c0_10 = arith.constant 0 : index
    %c0_11 = arith.constant 0 : index
    %15 = vector.load %arg5[%c0_10, %c0_11] : memref<1x512xf32, #tpu.memory_space<vmem>>, vector<1x512xf32>
    %16 = vector.broadcast %15 : vector<1x512xf32> to vector<8x512xf32>
    %17 = arith.addf %14, %16 : vector<8x512xf32>
    %18 = vector.extract_strided_slice %17 {offsets = [0, 0], sizes = [8, 128], strides = [1, 1]} : vector<8x512xf32> to vector<8x128xf32>
    %19 = arith.negf %18 : vector<8x128xf32>
    %20 = math.exp %19 : vector<8x128xf32>
    %cst_12 = arith.constant 1.000000e+00 : f32
    %21 = vector.broadcast %cst_12 : f32 to vector<8x128xf32>
    %22 = arith.addf %21, %20 : vector<8x128xf32>
    %23 = arith.divf %21, %22 : vector<8x128xf32>
    %24 = vector.extract_strided_slice %17 {offsets = [0, 128], sizes = [8, 128], strides = [1, 1]} : vector<8x512xf32> to vector<8x128xf32>
    %25 = arith.negf %24 : vector<8x128xf32>
    %26 = math.exp %25 : vector<8x128xf32>
    %cst_13 = arith.constant 1.000000e+00 : f32
    %27 = vector.broadcast %cst_13 : f32 to vector<8x128xf32>
    %28 = arith.addf %27, %26 : vector<8x128xf32>
    %29 = arith.divf %27, %28 : vector<8x128xf32>
    %30 = vector.extract_strided_slice %17 {offsets = [0, 256], sizes = [8, 128], strides = [1, 1]} : vector<8x512xf32> to vector<8x128xf32>
    %31 = math.tanh %30 : vector<8x128xf32>
    %32 = vector.extract_strided_slice %17 {offsets = [0, 384], sizes = [8, 128], strides = [1, 1]} : vector<8x512xf32> to vector<8x128xf32>
    %33 = arith.negf %32 : vector<8x128xf32>
    %34 = math.exp %33 : vector<8x128xf32>
    %cst_14 = arith.constant 1.000000e+00 : f32
    %35 = vector.broadcast %cst_14 : f32 to vector<8x128xf32>
    %36 = arith.addf %35, %34 : vector<8x128xf32>
    %37 = arith.divf %35, %36 : vector<8x128xf32>
    %38 = arith.mulf %29, %10 : vector<8x128xf32>
    %39 = arith.mulf %23, %31 : vector<8x128xf32>
    %40 = arith.addf %38, %39 : vector<8x128xf32>
    %41 = math.tanh %40 : vector<8x128xf32>
    %42 = arith.mulf %37, %41 : vector<8x128xf32>
    %43 = arith.truncf %42 : vector<8x128xf32> to vector<8x128xbf16>
    %c0_15 = arith.constant 0 : index
    %c0_16 = arith.constant 0 : index
    %44 = vector.load %arg6[%c0_15, %c0_16] : memref<128x128xbf16, #tpu.memory_space<vmem>>, vector<128x128xbf16>
    %cst_17 = arith.constant dense<0.000000e+00> : vector<8x128xf32>
    %45 = tpu.matmul %43, %44, %cst_17 {dimension_numbers = #tpu.dot_dimension_numbers<[1], [0], [0], [1], [0, 0, 1, 1], [], []>} : vector<8x128xbf16>, vector<128x128xbf16>, vector<8x128xf32> -> vector<8x128xf32>
    %c0_18 = arith.constant 0 : index
    %c0_19 = arith.constant 0 : index
    %46 = vector.load %arg7[%c0_18, %c0_19] : memref<1x128xf32, #tpu.memory_space<vmem>>, vector<1x128xf32>
    %47 = vector.broadcast %46 : vector<1x128xf32> to vector<8x128xf32>
    %48 = arith.addf %45, %47 : vector<8x128xf32>
    %c0_20 = arith.constant 0 : index
    %c0_21 = arith.constant 0 : index
    %49 = vector.load %arg8[%c0_20, %c0_21] : memref<8x128xf32, #tpu.memory_space<vmem>>, vector<8x128xf32>
    tpu.vector_store %arg8[%c0_20, %c0_21], %48 {strides = array<i32>} : memref<8x128xf32, #tpu.memory_space<vmem>>, vector<8x128xf32>,
    %c0_22 = arith.constant 0 : index
    %c0_23 = arith.constant 0 : index
    %50 = vector.load %arg9[%c0_22, %c0_23] : memref<8x128xf32, #tpu.memory_space<vmem>>, vector<8x128xf32>
    tpu.vector_store %arg9[%c0_22, %c0_23], %42 {strides = array<i32>} : memref<8x128xf32, #tpu.memory_space<vmem>>, vector<8x128xf32>,
    %c0_24 = arith.constant 0 : index
    %c0_25 = arith.constant 0 : index
    %51 = vector.load %arg10[%c0_24, %c0_25] : memref<8x128xf32, #tpu.memory_space<vmem>>, vector<8x128xf32>
    tpu.vector_store %arg10[%c0_24, %c0_25], %40 {strides = array<i32>} : memref<8x128xf32, #tpu.memory_space<vmem>>, vector<8x128xf32>,
    return
  }
}

</mosaic_0001>

<llo_original>
// kernel: tpu_custom_call.1
$region0: #{tpu_custom_call.1}
  #allocation0 [shape = 'u32[]', space=smem, size = 0x4, offset = 0x4, fixed_abs, tag = 'smem constant byte address 0x4 - core index']
  #allocation1 [shape = 'u32[72,128]{1,0:T(1,128)}', space=vmem, size = 0x9000, scoped, tag = 'internal scratch']
  %s0 = inlined_call_operand.vmem [shape: s32[8,1], index: 0, kind: input, shape index: {}]
  %s1 = inlined_call_operand.hbm [shape: f32[8,128], index: 1, kind: input, shape index: {}, may-alias: {1,9}]
  %s2 = inlined_call_operand.hbm [shape: f32[8,128], index: 2, kind: input, shape index: {}, may-alias: {2,10}]
  %s3 = inlined_call_operand.hbm [shape: bf16[128,128], index: 3, kind: input, shape index: {}]
  %s4 = inlined_call_operand.hbm [shape: bf16[256,512], index: 4, kind: input, shape index: {}]
  %s5 = inlined_call_operand.vmem [shape: f32[1,512], index: 5, kind: input, shape index: {}]
  %s6 = inlined_call_operand.hbm [shape: bf16[128,128], index: 6, kind: input, shape index: {}]
  %s7 = inlined_call_operand.vmem [shape: f32[1,128], index: 7, kind: input, shape index: {}]
  %s8 = inlined_call_operand.hbm [shape: f32[8,128], index: 8, kind: output, shape index: {0}]
  %s9 = inlined_call_operand.hbm [shape: f32[8,128], index: 9, kind: output, shape index: {1}, may-alias: {1,9}]
  %s10 = inlined_call_operand.hbm [shape: f32[8,128], index: 10, kind: output, shape index: {2}, may-alias: {2,10}]
  %11 = xla_tuple %s8, %s9, %s10
  %s12 = sld [smem:[#allocation0]]
  $region78: #{tpu_custom_call.1} parent=0
    _
  %s14 = ssub.s32 1, %s12
  %s15 = scalar_select 0, %s14, %s12
  $region1: #{tpu_custom_call.1} parent=0
    #allocation2 [shape = 'u8[4096]{0}', space=vmem, size = 0x1000, scoped, tag = 'input window, operand 1, single buffered']
    #allocation3 [shape = 's32[1]{0}', space=sflag, size = 0x4, scoped, tag = 'scoped memory for tpu_custom_call.1']
    #allocation4 [shape = 's32[1]{0}', space=sflag, size = 0x4, scoped, tag = 'scoped memory for tpu_custom_call.1']
    #allocation5 [shape = 'u8[4096]{0}', space=vmem, size = 0x1000, scoped, tag = 'input window, operand 2, single buffered']
    #allocation6 [shape = 's32[1]{0}', space=sflag, size = 0x4, scoped, tag = 'scoped memory for tpu_custom_call.1']
    #allocation7 [shape = 'u8[32768]{0}', space=vmem, size = 0x8000, scoped, tag = 'input window, operand 3, single buffered']
    #allocation8 [shape = 'u8[262144]{0}', space=vmem, size = 0x40000, scoped, tag = 'input window, operand 4, single buffered']
    #allocation9 [shape = 's32[1]{0}', space=sflag, size = 0x4, scoped, tag = 'scoped memory for tpu_custom_call.1']
    #allocation10 [shape = 'u8[32768]{0}', space=vmem, size = 0x8000, scoped, tag = 'input window, operand 6, single buffered']
    #allocation11 [shape = 'u8[4096]{0}', space=vmem, size = 0x1000, scoped, tag = 'output window, operand 0, single buffered']
    #allocation12 [shape = 'u8[4096]{0}', space=vmem, size = 0x1000, scoped, tag = 'output window, operand 1, single buffered']
    #allocation13 [shape = 's32[1]{0}', space=sflag, size = 0x4, scoped, tag = 'scoped memory for tpu_custom_call.1']
    #allocation14 [shape = 'u8[4096]{0}', space=vmem, size = 0x1000, scoped, tag = 'output window, operand 2, single buffered']
    %16 = vsyncpa [#allocation3], 0
    %17 = vsyncpa [#allocation6], 0
    %18 = vsyncpa [#allocation9], 0
    %19 = vsyncpa [#allocation4], 0
    %20 = vsyncpa [#allocation13], 0
    // Predicated region
    $region2: #{tpu_custom_call.1} parent=1 // pred_check
      _
    $region3: #{tpu_custom_call.1} parent=1 // pred_check_branch
      %22 = sbr.rel (0) target = $region5
    $region4: #{tpu_custom_call.1} parent=1 // pred_region
      _
    $region5: #{tpu_custom_call.1} parent=1 // pred_fallthru
      _
    // Predicated region
    $region6: #{tpu_custom_call.1} parent=1 // pred_check
      _
    $region7: #{tpu_custom_call.1} parent=1 // pred_check_branch
      %24 = sbr.rel (0) target = $region9
    $region8: #{tpu_custom_call.1} parent=1 // pred_region
      %26 = vsyncadd [#allocation3], 0
      %s28 = sshll.u32 %s1, 4
      %s29 = int_to_ptr.hbm [resolvable:$true] %s28
      %s30 = sshll.u32 [#allocation2], 4
      %s31 = int_to_ptr.vmem [resolvable:$true] %s30
      %33 = dma.hbm_to_vmem [thread:$0]  %s29, 128, %s31, [#allocation3]
    $region9: #{tpu_custom_call.1} parent=1 // pred_fallthru
      _
    // Predicated region
    $region10: #{tpu_custom_call.1} parent=1 // pred_check
      _
    $region11: #{tpu_custom_call.1} parent=1 // pred_check_branch
      %35 = sbr.rel (0) target = $region13
    $region12: #{tpu_custom_call.1} parent=1 // pred_region
      %37 = vsyncadd [#allocation6], 0
      %s39 = sshll.u32 %s2, 4
      %s40 = int_to_ptr.hbm [resolvable:$true] %s39
      %s41 = sshll.u32 [#allocation5], 4
      %s42 = int_to_ptr.vmem [resolvable:$true] %s41
      %44 = dma.hbm_to_vmem [thread:$0]  %s40, 128, %s42, [#allocation6]
    $region13: #{tpu_custom_call.1} parent=1 // pred_fallthru
      _
    // Predicated region
    $region14: #{tpu_custom_call.1} parent=1 // pred_check
      _
    $region15: #{tpu_custom_call.1} parent=1 // pred_check_branch
      %46 = sbr.rel (0) target = $region17
    $region16: #{tpu_custom_call.1} parent=1 // pred_region
      %48 = vsyncadd [#allocation6], 0
      %s49 = sshll.u32 %s3, 4
      %s50 = int_to_ptr.hbm [resolvable:$true] %s49
      %s51 = sshll.u32 [#allocation7], 4
      %s52 = int_to_ptr.vmem [resolvable:$true] %s51
      %57 = dma.hbm_to_vmem [thread:$0]  %s50, 1024, %s52, [#allocation6], 64, 64, 4
    $region17: #{tpu_custom_call.1} parent=1 // pred_fallthru
      _
    // Predicated region
    $region18: #{tpu_custom_call.1} parent=1 // pred_check
      _
    $region19: #{tpu_custom_call.1} parent=1 // pred_check_branch
      %59 = sbr.rel (0) target = $region21
    $region20: #{tpu_custom_call.1} parent=1 // pred_region
      %61 = vsyncadd [#allocation9], 0
      %s62 = sshll.u32 %s4, 4
      %s63 = int_to_ptr.hbm [resolvable:$true] %s62
      %s64 = sshll.u32 [#allocation8], 4
      %s65 = int_to_ptr.vmem [resolvable:$true] %s64
      %70 = dma.hbm_to_vmem [thread:$0]  %s63, 8192, %s65, [#allocation9], 256, 256, 16
    $region21: #{tpu_custom_call.1} parent=1 // pred_fallthru
      _
    // Predicated region
    $region22: #{tpu_custom_call.1} parent=1 // pred_check
      _
    $region23: #{tpu_custom_call.1} parent=1 // pred_check_branch
      %72 = sbr.rel (0) target = $region25
    $region24: #{tpu_custom_call.1} parent=1 // pred_region
      _
    $region25: #{tpu_custom_call.1} parent=1 // pred_fallthru
      _
    // Predicated region
    $region26: #{tpu_custom_call.1} parent=1 // pred_check
      _
    $region27: #{tpu_custom_call.1} parent=1 // pred_check_branch
      %74 = sbr.rel (0) target = $region29
    $region28: #{tpu_custom_call.1} parent=1 // pred_region
      %76 = vsyncadd [#allocation9], 0
      %s77 = sshll.u32 %s6, 4
      %s78 = int_to_ptr.hbm [resolvable:$true] %s77
      %s79 = sshll.u32 [#allocation10], 4
      %s80 = int_to_ptr.vmem [resolvable:$true] %s79
      %85 = dma.hbm_to_vmem [thread:$0]  %s78, 1024, %s80, [#allocation9], 64, 64, 4
    $region29: #{tpu_custom_call.1} parent=1 // pred_fallthru
      _
    // Predicated region
    $region30: #{tpu_custom_call.1} parent=1 // pred_check
      _
    $region31: #{tpu_custom_call.1} parent=1 // pred_check_branch
      %87 = sbr.rel (0) target = $region33
    $region32: #{tpu_custom_call.1} parent=1 // pred_region
      _
    $region33: #{tpu_custom_call.1} parent=1 // pred_fallthru
      _
    // Predicated region
    $region34: #{tpu_custom_call.1} parent=1 // pred_check
      _
    $region35: #{tpu_custom_call.1} parent=1 // pred_check_branch
      %89 = sbr.rel (0) target = $region37
    $region36: #{tpu_custom_call.1} parent=1 // pred_region
      %91 = dma.done [#allocation3], 128
    $region37: #{tpu_custom_call.1} parent=1 // pred_fallthru
      _
    // Predicated region
    $region38: #{tpu_custom_call.1} parent=1 // pred_check
      _
    $region39: #{tpu_custom_call.1} parent=1 // pred_check_branch
      %93 = sbr.rel (0) target = $region41
    $region40: #{tpu_custom_call.1} parent=1 // pred_region
      %95 = dma.done [#allocation6], 128
    $region41: #{tpu_custom_call.1} parent=1 // pred_fallthru
      _
    // Predicated region
    $region42: #{tpu_custom_call.1} parent=1 // pred_check
      _
    $region43: #{tpu_custom_call.1} parent=1 // pred_check_branch
      %97 = sbr.rel (0) target = $region45
    $region44: #{tpu_custom_call.1} parent=1 // pred_region
      %99 = dma.done [#allocation6], 1024
    $region45: #{tpu_custom_call.1} parent=1 // pred_fallthru
      _
    // Predicated region
    $region46: #{tpu_custom_call.1} parent=1 // pred_check
      _
    $region47: #{tpu_custom_call.1} parent=1 // pred_check_branch
      %101 = sbr.rel (0) target = $region49
    $region48: #{tpu_custom_call.1} parent=1 // pred_region
      %103 = dma.done [#allocation9], 8192
    $region49: #{tpu_custom_call.1} parent=1 // pred_fallthru
      _
    // Predicated region
    $region50: #{tpu_custom_call.1} parent=1 // pred_check
      _
    $region51: #{tpu_custom_call.1} parent=1 // pred_check_branch
      %105 = sbr.rel (0) target = $region53
    $region52: #{tpu_custom_call.1} parent=1 // pred_region
      %107 = dma.done [#allocation9], 1024
    $region53: #{tpu_custom_call.1} parent=1 // pred_fallthru
      _
    %v108 = vld [vmem:[%s0] sm:$0xff]
    %v109 = vlaneseq
    %v110 = vand.u32 %v109, 127
    %111 = vset.pattern.permute.xlu0 0
    %112 = vperm.xlu0 %111, %v108
    %v113 = vpop.permute.xlu0 %112
    %vm114 = vcmp.eq.s32.totalorder %v110, %v113
    %v115 = vsel %vm114, 1, 0
    %v116 = vcvt.s32.f32 %v115
    %v117 = vpack.c.bf16 %v116, %v116
    %v118 = vld [vmem:[#allocation7] sm:$0xf]
    %v119 = vld [vmem:[#allocation7 + $0x4] sm:$0xf]
    %v120 = vld [vmem:[#allocation7 + $0x8] sm:$0xf]
    %v121 = vld [vmem:[#allocation7 + $0xc] sm:$0xf]
    %v122 = vld [vmem:[#allocation7 + $0x10] sm:$0xf]
    %v123 = vld [vmem:[#allocation7 + $0x14] sm:$0xf]
    %v124 = vld [vmem:[#allocation7 + $0x18] sm:$0xf]
    %v125 = vld [vmem:[#allocation7 + $0x1c] sm:$0xf]
    %v126 = vld [vmem:[#allocation7 + $0x20] sm:$0xf]
    %v127 = vld [vmem:[#allocation7 + $0x24] sm:$0xf]
    %v128 = vld [vmem:[#allocation7 + $0x28] sm:$0xf]
    %v129 = vld [vmem:[#allocation7 + $0x2c] sm:$0xf]
    %v130 = vld [vmem:[#allocation7 + $0x30] sm:$0xf]
    %v131 = vld [vmem:[#allocation7 + $0x34] sm:$0xf]
    %v132 = vld [vmem:[#allocation7 + $0x38] sm:$0xf]
    %v133 = vld [vmem:[#allocation7 + $0x3c] sm:$0xf]
    %v150 = vunpack.c.l.b16 %v118
    %v151 = vunpack.c.l.b16 %v119
    %v152 = vunpack.c.l.b16 %v120
    %v153 = vunpack.c.l.b16 %v121
    %v154 = vunpack.c.l.b16 %v122
    %v155 = vunpack.c.l.b16 %v123
    %v156 = vunpack.c.l.b16 %v124
    %v157 = vunpack.c.l.b16 %v125
    %v158 = vunpack.c.l.b16 %v126
    %v159 = vunpack.c.l.b16 %v127
    %v160 = vunpack.c.l.b16 %v128
    %v161 = vunpack.c.l.b16 %v129
    %v162 = vunpack.c.l.b16 %v130
    %v163 = vunpack.c.l.b16 %v131
    %v164 = vunpack.c.l.b16 %v132
    %v165 = vunpack.c.l.b16 %v133
    %v166 = vpack.c.b16 %v151, %v150
    %v167 = vpack.c.b16 %v153, %v152
    %v168 = vpack.c.b16 %v155, %v154
    %v169 = vpack.c.b16 %v157, %v156
    %v170 = vpack.c.b16 %v159, %v158
    %v171 = vpack.c.b16 %v161, %v160
    %v172 = vpack.c.b16 %v163, %v162
    %v173 = vpack.c.b16 %v165, %v164
    %182 = vmatpush.bf16.msra.mxu0 %v173
    %183 = vmatpush.bf16.msra.mxu0 %v172
    %184 = vmatpush.bf16.msra.mxu0 %v171
    %185 = vmatpush.bf16.msra.mxu0 %v170
    %186 = vmatpush.bf16.msra.mxu0 %v169
    %187 = vmatpush.bf16.msra.mxu0 %v168
    %188 = vmatpush.bf16.msra.mxu0 %v167
    %189 = vmatpush.bf16.msra.mxu0 %v166
    %190 = vmatmul.bf16.gmra.mxu0 %v117
    %v191 = vpop.f32.mrf.mxu0
    %v192 = vadd.f32 0.0, %v191
    %v193 = vpop.f32.mrf.mxu0
    %194 = vdwg.mxu0
    %v195 = vld [vmem:[#allocation2] sm:$0xff]
    %v196 = vld [vmem:[#allocation5] sm:$0xff]
    %v197 = vpack.c.bf16 %v192, %v192
    %v198 = vpack.c.bf16 %v195, %v195
    %v199 = vld [vmem:[#allocation8] sm:$0xff]
    %v200 = vld [vmem:[#allocation8 + $0x8] sm:$0xff]
    %v201 = vld [vmem:[#allocation8 + $0x10] sm:$0xff]
    %v202 = vld [vmem:[#allocation8 + $0x18] sm:$0xff]
    %v203 = vld [vmem:[#allocation8 + $0x20] sm:$0xff]
    %v204 = vld [vmem:[#allocation8 + $0x28] sm:$0xff]
    %v205 = vld [vmem:[#allocation8 + $0x30] sm:$0xff]
    %v206 = vld [vmem:[#allocation8 + $0x38] sm:$0xff]
    %v207 = vld [vmem:[#allocation8 + $0x40] sm:$0xff]
    %v208 = vld [vmem:[#allocation8 + $0x48] sm:$0xff]
    %v209 = vld [vmem:[#allocation8 + $0x50] sm:$0xff]
    %v210 = vld [vmem:[#allocation8 + $0x58] sm:$0xff]
    %v211 = vld [vmem:[#allocation8 + $0x60] sm:$0xff]
    %v212 = vld [vmem:[#allocation8 + $0x68] sm:$0xff]
    %v213 = vld [vmem:[#allocation8 + $0x70] sm:$0xff]
    %v214 = vld [vmem:[#allocation8 + $0x78] sm:$0xff]
    %v215 = vld [vmem:[#allocation8 + $0x80] sm:$0xff]
    %v216 = vld [vmem:[#allocation8 + $0x88] sm:$0xff]
    %v217 = vld [vmem:[#allocation8 + $0x90] sm:$0xff]
    %v218 = vld [vmem:[#allocation8 + $0x98] sm:$0xff]
    %v219 = vld [vmem:[#allocation8 + $0xa0] sm:$0xff]
    %v220 = vld [vmem:[#allocation8 + $0xa8] sm:$0xff]
    %v221 = vld [vmem:[#allocation8 + $0xb0] sm:$0xff]
    %v222 = vld [vmem:[#allocation8 + $0xb8] sm:$0xff]
    %v223 = vld [vmem:[#allocation8 + $0xc0] sm:$0xff]
    %v224 = vld [vmem:[#allocation8 + $0xc8] sm:$0xff]
    %v225 = vld [vmem:[#allocation8 + $0xd0] sm:$0xff]
    %v226 = vld [vmem:[#allocation8 + $0xd8] sm:$0xff]
    %v227 = vld [vmem:[#allocation8 + $0xe0] sm:$0xff]
    %v228 = vld [vmem:[#allocation8 + $0xe8] sm:$0xff]
    %v229 = vld [vmem:[#allocation8 + $0xf0] sm:$0xff]
    %v230 = vld [vmem:[#allocation8 + $0xf8] sm:$0xff]
    %v231 = vld [vmem:[#allocation8 + $0x100] sm:$0xff]
    %v232 = vld [vmem:[#allocation8 + $0x108] sm:$0xff]
    %v233 = vld [vmem:[#allocation8 + $0x110] sm:$0xff]
    %v234 = vld [vmem:[#allocation8 + $0x118] sm:$0xff]
    %v235 = vld [vmem:[#allocation8 + $0x120] sm:$0xff]
    %v236 = vld [vmem:[#allocation8 + $0x128] sm:$0xff]
    %v237 = vld [vmem:[#allocation8 + $0x130] sm:$0xff]
    %v238 = vld [vmem:[#allocation8 + $0x138] sm:$0xff]
    %v239 = vld [vmem:[#allocation8 + $0x140] sm:$0xff]
    %v240 = vld [vmem:[#allocation8 + $0x148] sm:$0xff]
    %v241 = vld [vmem:[#allocation8 + $0x150] sm:$0xff]
    %v242 = vld [vmem:[#allocation8 + $0x158] sm:$0xff]
    %v243 = vld [vmem:[#allocation8 + $0x160] sm:$0xff]
    %v244 = vld [vmem:[#allocation8 + $0x168] sm:$0xff]
    %v245 = vld [vmem:[#allocation8 + $0x170] sm:$0xff]
    %v246 = vld [vmem:[#allocation8 + $0x178] sm:$0xff]
    %v247 = vld [vmem:[#allocation8 + $0x180] sm:$0xff]
    %v248 = vld [vmem:[#allocation8 + $0x188] sm:$0xff]
    %v249 = vld [vmem:[#allocation8 + $0x190] sm:$0xff]
    %v250 = vld [vmem:[#allocation8 + $0x198] sm:$0xff]
    %v251 = vld [vmem:[#allocation8 + $0x1a0] sm:$0xff]
    %v252 = vld [vmem:[#allocation8 + $0x1a8] sm:$0xff]
    %v253 = vld [vmem:[#allocation8 + $0x1b0] sm:$0xff]
    %v254 = vld [vmem:[#allocation8 + $0x1b8] sm:$0xff]
    %v255 = vld [vmem:[#allocation8 + $0x1c0] sm:$0xff]
    %v256 = vld [vmem:[#allocation8 + $0x1c8] sm:$0xff]
    %v257 = vld [vmem:[#allocation8 + $0x1d0] sm:$0xff]
    %v258 = vld [vmem:[#allocation8 + $0x1d8] sm:$0xff]
    %v259 = vld [vmem:[#allocation8 + $0x1e0] sm:$0xff]
    %v260 = vld [vmem:[#allocation8 + $0x1e8] sm:$0xff]
    %v261 = vld [vmem:[#allocation8 + $0x1f0] sm:$0xff]
    %v262 = vld [vmem:[#allocation8 + $0x1f8] sm:$0xff]
    %v263 = vld [vmem:[%s5] sm:$0xf]
    %v265 = vperm.slane %v263, 0
    %v266 = vperm.slane %v263, 1
    %v267 = vperm.slane %v263, 2
    %v268 = vperm.slane %v263, 3
    %v337 = vunpack.c.l.b16 %v199
    %v338 = vunpack.c.h.b16 %v199
    %v339 = vunpack.c.l.b16 %v200
    %v340 = vunpack.c.h.b16 %v200
    %v341 = vunpack.c.l.b16 %v201
    %v342 = vunpack.c.h.b16 %v201
    %v343 = vunpack.c.l.b16 %v202
    %v344 = vunpack.c.h.b16 %v202
    %v345 = vunpack.c.l.b16 %v203
    %v346 = vunpack.c.h.b16 %v203
    %v347 = vunpack.c.l.b16 %v204
    %v348 = vunpack.c.h.b16 %v204
    %v349 = vunpack.c.l.b16 %v205
    %v350 = vunpack.c.h.b16 %v205
    %v351 = vunpack.c.l.b16 %v206
    %v352 = vunpack.c.h.b16 %v206
    %v353 = vunpack.c.l.b16 %v207
    %v354 = vunpack.c.h.b16 %v207
    %v355 = vunpack.c.l.b16 %v208
    %v356 = vunpack.c.h.b16 %v208
    %v357 = vunpack.c.l.b16 %v209
    %v358 = vunpack.c.h.b16 %v209
    %v359 = vunpack.c.l.b16 %v210
    %v360 = vunpack.c.h.b16 %v210
    %v361 = vunpack.c.l.b16 %v211
    %v362 = vunpack.c.h.b16 %v211
    %v363 = vunpack.c.l.b16 %v212
    %v364 = vunpack.c.h.b16 %v212
    %v365 = vunpack.c.l.b16 %v213
    %v366 = vunpack.c.h.b16 %v213
    %v367 = vunpack.c.l.b16 %v214
    %v368 = vunpack.c.h.b16 %v214
    %v369 = vunpack.c.l.b16 %v215
    %v370 = vunpack.c.h.b16 %v215
    %v371 = vunpack.c.l.b16 %v216
    %v372 = vunpack.c.h.b16 %v216
    %v373 = vunpack.c.l.b16 %v217
    %v374 = vunpack.c.h.b16 %v217
    %v375 = vunpack.c.l.b16 %v218
    %v376 = vunpack.c.h.b16 %v218
    %v377 = vunpack.c.l.b16 %v219
    %v378 = vunpack.c.h.b16 %v219
    %v379 = vunpack.c.l.b16 %v220
    %v380 = vunpack.c.h.b16 %v220
    %v381 = vunpack.c.l.b16 %v221
    %v382 = vunpack.c.h.b16 %v221
    %v383 = vunpack.c.l.b16 %v222
    %v384 = vunpack.c.h.b16 %v222
    %v385 = vunpack.c.l.b16 %v223
    %v386 = vunpack.c.h.b16 %v223
    %v387 = vunpack.c.l.b16 %v224
    %v388 = vunpack.c.h.b16 %v224
    %v389 = vunpack.c.l.b16 %v225
    %v390 = vunpack.c.h.b16 %v225
    %v391 = vunpack.c.l.b16 %v226
    %v392 = vunpack.c.h.b16 %v226
    %v393 = vunpack.c.l.b16 %v227
    %v394 = vunpack.c.h.b16 %v227
    %v395 = vunpack.c.l.b16 %v228
    %v396 = vunpack.c.h.b16 %v228
    %v397 = vunpack.c.l.b16 %v229
    %v398 = vunpack.c.h.b16 %v229
    %v399 = vunpack.c.l.b16 %v230
    %v400 = vunpack.c.h.b16 %v230
    %v401 = vunpack.c.l.b16 %v231
    %v402 = vunpack.c.h.b16 %v231
    %v403 = vunpack.c.l.b16 %v232
    %v404 = vunpack.c.h.b16 %v232
    %v405 = vunpack.c.l.b16 %v233
    %v406 = vunpack.c.h.b16 %v233
    %v407 = vunpack.c.l.b16 %v234
    %v408 = vunpack.c.h.b16 %v234
    %v409 = vunpack.c.l.b16 %v235
    %v410 = vunpack.c.h.b16 %v235
    %v411 = vunpack.c.l.b16 %v236
    %v412 = vunpack.c.h.b16 %v236
    %v413 = vunpack.c.l.b16 %v237
    %v414 = vunpack.c.h.b16 %v237
    %v415 = vunpack.c.l.b16 %v238
    %v416 = vunpack.c.h.b16 %v238
    %v417 = vunpack.c.l.b16 %v239
    %v418 = vunpack.c.h.b16 %v239
    %v419 = vunpack.c.l.b16 %v240
    %v420 = vunpack.c.h.b16 %v240
    %v421 = vunpack.c.l.b16 %v241
    %v422 = vunpack.c.h.b16 %v241
    %v423 = vunpack.c.l.b16 %v242
    %v424 = vunpack.c.h.b16 %v242
    %v425 = vunpack.c.l.b16 %v243
    %v426 = vunpack.c.h.b16 %v243
    %v427 = vunpack.c.l.b16 %v244
    %v428 = vunpack.c.h.b16 %v244
    %v429 = vunpack.c.l.b16 %v245
    %v430 = vunpack.c.h.b16 %v245
    %v431 = vunpack.c.l.b16 %v246
    %v432 = vunpack.c.h.b16 %v246
    %v433 = vunpack.c.l.b16 %v247
    %v434 = vunpack.c.h.b16 %v247
    %v435 = vunpack.c.l.b16 %v248
    %v436 = vunpack.c.h.b16 %v248
    %v437 = vunpack.c.l.b16 %v249
    %v438 = vunpack.c.h.b16 %v249
    %v439 = vunpack.c.l.b16 %v250
    %v440 = vunpack.c.h.b16 %v250
    %v441 = vunpack.c.l.b16 %v251
    %v442 = vunpack.c.h.b16 %v251
    %v443 = vunpack.c.l.b16 %v252
    %v444 = vunpack.c.h.b16 %v252
    %v445 = vunpack.c.l.b16 %v253
    %v446 = vunpack.c.h.b16 %v253
    %v447 = vunpack.c.l.b16 %v254
    %v448 = vunpack.c.h.b16 %v254
    %v449 = vunpack.c.l.b16 %v255
    %v450 = vunpack.c.h.b16 %v255
    %v451 = vunpack.c.l.b16 %v256
    %v452 = vunpack.c.h.b16 %v256
    %v453 = vunpack.c.l.b16 %v257
    %v454 = vunpack.c.h.b16 %v257
    %v455 = vunpack.c.l.b16 %v258
    %v456 = vunpack.c.h.b16 %v258
    %v457 = vunpack.c.l.b16 %v259
    %v458 = vunpack.c.h.b16 %v259
    %v459 = vunpack.c.l.b16 %v260
    %v460 = vunpack.c.h.b16 %v260
    %v461 = vunpack.c.l.b16 %v261
    %v462 = vunpack.c.h.b16 %v261
    %v463 = vunpack.c.l.b16 %v262
    %v464 = vunpack.c.h.b16 %v262
    %v465 = vpack.c.b16 %v341, %v337
    %v466 = vpack.c.b16 %v342, %v338
    %v467 = vpack.c.b16 %v343, %v339
    %v468 = vpack.c.b16 %v344, %v340
    %v469 = vpack.c.b16 %v349, %v345
    %v470 = vpack.c.b16 %v350, %v346
    %v471 = vpack.c.b16 %v351, %v347
    %v472 = vpack.c.b16 %v352, %v348
    %v473 = vpack.c.b16 %v357, %v353
    %v474 = vpack.c.b16 %v358, %v354
    %v475 = vpack.c.b16 %v359, %v355
    %v476 = vpack.c.b16 %v360, %v356
    %v477 = vpack.c.b16 %v365, %v361
    %v478 = vpack.c.b16 %v366, %v362
    %v479 = vpack.c.b16 %v367, %v363
    %v480 = vpack.c.b16 %v368, %v364
    %v481 = vpack.c.b16 %v373, %v369
    %v482 = vpack.c.b16 %v374, %v370
    %v483 = vpack.c.b16 %v375, %v371
    %v484 = vpack.c.b16 %v376, %v372
    %v485 = vpack.c.b16 %v381, %v377
    %v486 = vpack.c.b16 %v382, %v378
    %v487 = vpack.c.b16 %v383, %v379
    %v488 = vpack.c.b16 %v384, %v380
    %v489 = vpack.c.b16 %v389, %v385
    %v490 = vpack.c.b16 %v390, %v386
    %v491 = vpack.c.b16 %v391, %v387
    %v492 = vpack.c.b16 %v392, %v388
    %v493 = vpack.c.b16 %v397, %v393
    %v494 = vpack.c.b16 %v398, %v394
    %v495 = vpack.c.b16 %v399, %v395
    %v496 = vpack.c.b16 %v400, %v396
    %v497 = vpack.c.b16 %v405, %v401
    %v498 = vpack.c.b16 %v406, %v402
    %v499 = vpack.c.b16 %v407, %v403
    %v500 = vpack.c.b16 %v408, %v404
    %v501 = vpack.c.b16 %v413, %v409
    %v502 = vpack.c.b16 %v414, %v410
    %v503 = vpack.c.b16 %v415, %v411
    %v504 = vpack.c.b16 %v416, %v412
    %v505 = vpack.c.b16 %v421, %v417
    %v506 = vpack.c.b16 %v422, %v418
    %v507 = vpack.c.b16 %v423, %v419
    %v508 = vpack.c.b16 %v424, %v420
    %v509 = vpack.c.b16 %v429, %v425
    %v510 = vpack.c.b16 %v430, %v426
    %v511 = vpack.c.b16 %v431, %v427
    %v512 = vpack.c.b16 %v432, %v428
    %v513 = vpack.c.b16 %v437, %v433
    %v514 = vpack.c.b16 %v438, %v434
    %v515 = vpack.c.b16 %v439, %v435
    %v516 = vpack.c.b16 %v440, %v436
    %v517 = vpack.c.b16 %v445, %v441
    %v518 = vpack.c.b16 %v446, %v442
    %v519 = vpack.c.b16 %v447, %v443
    %v520 = vpack.c.b16 %v448, %v444
    %v521 = vpack.c.b16 %v453, %v449
    %v522 = vpack.c.b16 %v454, %v450
    %v523 = vpack.c.b16 %v455, %v451
    %v524 = vpack.c.b16 %v456, %v452
    %v525 = vpack.c.b16 %v461, %v457
    %v526 = vpack.c.b16 %v462, %v458
    %v527 = vpack.c.b16 %v463, %v459
    %v528 = vpack.c.b16 %v464, %v460
    %593 = vmatpush.bf16.msra.mxu0 %v493
    %594 = vmatpush.bf16.msra.mxu0 %v489
    %595 = vmatpush.bf16.msra.mxu0 %v485
    %596 = vmatpush.bf16.msra.mxu0 %v481
    %597 = vmatpush.bf16.msra.mxu0 %v477
    %598 = vmatpush.bf16.msra.mxu0 %v473
    %599 = vmatpush.bf16.msra.mxu0 %v469
    %600 = vmatpush.bf16.msra.mxu0 %v465
    %601 = vmatmul.bf16.gmra.mxu0 %v197
    %v602 = vpop.f32.mrf.mxu0
    %v603 = vadd.f32 %v265, %v602
    %v604 = vpop.f32.mrf.mxu0
    %605 = vdwg.mxu0
    %606 = vmatpush.bf16.msra.mxu0 %v525
    %607 = vmatpush.bf16.msra.mxu0 %v521
    %608 = vmatpush.bf16.msra.mxu0 %v517
    %609 = vmatpush.bf16.msra.mxu0 %v513
    %610 = vmatpush.bf16.msra.mxu0 %v509
    %611 = vmatpush.bf16.msra.mxu0 %v505
    %612 = vmatpush.bf16.msra.mxu0 %v501
    %613 = vmatpush.bf16.msra.mxu0 %v497
    %614 = vmatmul.bf16.gmra.mxu0 %v198
    %v615 = vpop.f32.mrf.mxu0
    %v616 = vadd.f32 %v603, %v615
    %v617 = vpop.f32.mrf.mxu0
    %618 = vdwg.mxu0
    %619 = vmatpush.bf16.msra.mxu0 %v494
    %620 = vmatpush.bf16.msra.mxu0 %v490
    %621 = vmatpush.bf16.msra.mxu0 %v486
    %622 = vmatpush.bf16.msra.mxu0 %v482
    %623 = vmatpush.bf16.msra.mxu0 %v478
    %624 = vmatpush.bf16.msra.mxu0 %v474
    %625 = vmatpush.bf16.msra.mxu0 %v470
    %626 = vmatpush.bf16.msra.mxu0 %v466
    %627 = vmatmul.bf16.gmra.mxu0 %v197
    %v628 = vpop.f32.mrf.mxu0
    %v629 = vadd.f32 %v266, %v628
    %v630 = vpop.f32.mrf.mxu0
    %631 = vdwg.mxu0
    %632 = vmatpush.bf16.msra.mxu0 %v526
    %633 = vmatpush.bf16.msra.mxu0 %v522
    %634 = vmatpush.bf16.msra.mxu0 %v518
    %635 = vmatpush.bf16.msra.mxu0 %v514
    %636 = vmatpush.bf16.msra.mxu0 %v510
    %637 = vmatpush.bf16.msra.mxu0 %v506
    %638 = vmatpush.bf16.msra.mxu0 %v502
    %639 = vmatpush.bf16.msra.mxu0 %v498
    %640 = vmatmul.bf16.gmra.mxu0 %v198
    %v641 = vpop.f32.mrf.mxu0
    %v642 = vadd.f32 %v629, %v641
    %v643 = vpop.f32.mrf.mxu0
    %644 = vdwg.mxu0
    %645 = vmatpush.bf16.msra.mxu0 %v495
    %646 = vmatpush.bf16.msra.mxu0 %v491
    %647 = vmatpush.bf16.msra.mxu0 %v487
    %648 = vmatpush.bf16.msra.mxu0 %v483
    %649 = vmatpush.bf16.msra.mxu0 %v479
    %650 = vmatpush.bf16.msra.mxu0 %v475
    %651 = vmatpush.bf16.msra.mxu0 %v471
    %652 = vmatpush.bf16.msra.mxu0 %v467
    %653 = vmatmul.bf16.gmra.mxu0 %v197
    %v654 = vpop.f32.mrf.mxu0
    %v655 = vadd.f32 %v267, %v654
    %v656 = vpop.f32.mrf.mxu0
    %657 = vdwg.mxu0
    %658 = vmatpush.bf16.msra.mxu0 %v527
    %659 = vmatpush.bf16.msra.mxu0 %v523
    %660 = vmatpush.bf16.msra.mxu0 %v519
    %661 = vmatpush.bf16.msra.mxu0 %v515
    %662 = vmatpush.bf16.msra.mxu0 %v511
    %663 = vmatpush.bf16.msra.mxu0 %v507
    %664 = vmatpush.bf16.msra.mxu0 %v503
    %665 = vmatpush.bf16.msra.mxu0 %v499
    %666 = vmatmul.bf16.gmra.mxu0 %v198
    %v667 = vpop.f32.mrf.mxu0
    %v668 = vadd.f32 %v655, %v667
    %v669 = vpop.f32.mrf.mxu0
    %670 = vdwg.mxu0
    %671 = vmatpush.bf16.msra.mxu0 %v496
    %672 = vmatpush.bf16.msra.mxu0 %v492
    %673 = vmatpush.bf16.msra.mxu0 %v488
    %674 = vmatpush.bf16.msra.mxu0 %v484
    %675 = vmatpush.bf16.msra.mxu0 %v480
    %676 = vmatpush.bf16.msra.mxu0 %v476
    %677 = vmatpush.bf16.msra.mxu0 %v472
    %678 = vmatpush.bf16.msra.mxu0 %v468
    %679 = vmatmul.bf16.gmra.mxu0 %v197
    %v680 = vpop.f32.mrf.mxu0
    %v681 = vadd.f32 %v268, %v680
    %v682 = vpop.f32.mrf.mxu0
    %683 = vdwg.mxu0
    %684 = vmatpush.bf16.msra.mxu0 %v528
    %685 = vmatpush.bf16.msra.mxu0 %v524
    %686 = vmatpush.bf16.msra.mxu0 %v520
    %687 = vmatpush.bf16.msra.mxu0 %v516
    %688 = vmatpush.bf16.msra.mxu0 %v512
    %689 = vmatpush.bf16.msra.mxu0 %v508
    %690 = vmatpush.bf16.msra.mxu0 %v504
    %691 = vmatpush.bf16.msra.mxu0 %v500
    %692 = vmatmul.bf16.gmra.mxu0 %v198
    %v693 = vpop.f32.mrf.mxu0
    %v694 = vadd.f32 %v681, %v693
    %v695 = vpop.f32.mrf.mxu0
    %696 = vdwg.mxu0
    %v697 = vxor.u32 %v616, 2147483648
    %v698 = vmul.f32 %v697, 1.442695
    %v699 = vpow.pop %v698
    %v700 = vadd.f32 %v699, 1.0
    %v701 = vrcp.pop %v700
    %v702 = vmul.f32 %v700, %v701
    %v703 = vsub.f32 1.0, %v702
    %v704 = vmul.f32 %v701, %v703
    %v705 = vadd.f32 %v701, %v704
    %vm706 = vweird.f32 %v700
    %vm707 = vweird.f32 %v701
    %vm708 = vmor %vm706, %vm707
    %v709 = vsel %vm708, %v701, %v705
    %v710 = vand.u32 2147483647, %v700
    %vm711 = vcmp.eq.f32.partialorder %v710, 8.507059e+37
    %v712 = vand.u32 %v700, 2147483648
    %v713 = vor.u32 1.1754944e-38, %v712
    %v714 = vsel %vm711, %v713, %v709
    %v715 = vmul.f32 1.0, %v714
    %v716 = vxor.u32 %v642, 2147483648
    %v717 = vmul.f32 %v716, 1.442695
    %v718 = vpow.pop %v717
    %v719 = vadd.f32 %v718, 1.0
    %v720 = vrcp.pop %v719
    %v721 = vmul.f32 %v719, %v720
    %v722 = vsub.f32 1.0, %v721
    %v723 = vmul.f32 %v720, %v722
    %v724 = vadd.f32 %v720, %v723
    %vm725 = vweird.f32 %v719
    %vm726 = vweird.f32 %v720
    %vm727 = vmor %vm725, %vm726
    %v728 = vsel %vm727, %v720, %v724
    %v729 = vand.u32 2147483647, %v719
    %vm730 = vcmp.eq.f32.partialorder %v729, 8.507059e+37
    %v731 = vand.u32 %v719, 2147483648
    %v732 = vor.u32 1.1754944e-38, %v731
    %v733 = vsel %vm730, %v732, %v728
    %v734 = vmul.f32 1.0, %v733
    %v735 = vtanh.pop %v668
    %v736 = vxor.u32 %v694, 2147483648
    %v737 = vmul.f32 %v736, 1.442695
    %v738 = vpow.pop %v737
    %v739 = vadd.f32 %v738, 1.0
    %v740 = vrcp.pop %v739
    %v741 = vmul.f32 %v739, %v740
    %v742 = vsub.f32 1.0, %v741
    %v743 = vmul.f32 %v740, %v742
    %v744 = vadd.f32 %v740, %v743
    %vm745 = vweird.f32 %v739
    %vm746 = vweird.f32 %v740
    %vm747 = vmor %vm745, %vm746
    %v748 = vsel %vm747, %v740, %v744
    %v749 = vand.u32 2147483647, %v739
    %vm750 = vcmp.eq.f32.partialorder %v749, 8.507059e+37
    %v751 = vand.u32 %v739, 2147483648
    %v752 = vor.u32 1.1754944e-38, %v751
    %v753 = vsel %vm750, %v752, %v748
    %v754 = vmul.f32 1.0, %v753
    %v755 = vmul.f32 %v734, %v196
    %v756 = vmul.f32 %v715, %v735
    %v757 = vadd.f32 %v755, %v756
    %v758 = vtanh.pop %v757
    %v759 = vmul.f32 %v754, %v758
    %v760 = vpack.c.bf16 %v759, %v759
    %v761 = vld [vmem:[#allocation10] sm:$0xf]
    %v762 = vld [vmem:[#allocation10 + $0x4] sm:$0xf]
    %v763 = vld [vmem:[#allocation10 + $0x8] sm:$0xf]
    %v764 = vld [vmem:[#allocation10 + $0xc] sm:$0xf]
    %v765 = vld [vmem:[#allocation10 + $0x10] sm:$0xf]
    %v766 = vld [vmem:[#allocation10 + $0x14] sm:$0xf]
    %v767 = vld [vmem:[#allocation10 + $0x18] sm:$0xf]
    %v768 = vld [vmem:[#allocation10 + $0x1c] sm:$0xf]
    %v769 = vld [vmem:[#allocation10 + $0x20] sm:$0xf]
    %v770 = vld [vmem:[#allocation10 + $0x24] sm:$0xf]
    %v771 = vld [vmem:[#allocation10 + $0x28] sm:$0xf]
    %v772 = vld [vmem:[#allocation10 + $0x2c] sm:$0xf]
    %v773 = vld [vmem:[#allocation10 + $0x30] sm:$0xf]
    %v774 = vld [vmem:[#allocation10 + $0x34] sm:$0xf]
    %v775 = vld [vmem:[#allocation10 + $0x38] sm:$0xf]
    %v776 = vld [vmem:[#allocation10 + $0x3c] sm:$0xf]
    %v777 = vld [vmem:[%s7] sm:$0x1]
    %v779 = vperm.slane %v777, 0
    %v797 = vunpack.c.l.b16 %v761
    %v798 = vunpack.c.l.b16 %v762
    %v799 = vunpack.c.l.b16 %v763
    %v800 = vunpack.c.l.b16 %v764
    %v801 = vunpack.c.l.b16 %v765
    %v802 = vunpack.c.l.b16 %v766
    %v803 = vunpack.c.l.b16 %v767
    %v804 = vunpack.c.l.b16 %v768
    %v805 = vunpack.c.l.b16 %v769
    %v806 = vunpack.c.l.b16 %v770
    %v807 = vunpack.c.l.b16 %v771
    %v808 = vunpack.c.l.b16 %v772
    %v809 = vunpack.c.l.b16 %v773
    %v810 = vunpack.c.l.b16 %v774
    %v811 = vunpack.c.l.b16 %v775
    %v812 = vunpack.c.l.b16 %v776
    %v813 = vpack.c.b16 %v798, %v797
    %v814 = vpack.c.b16 %v800, %v799
    %v815 = vpack.c.b16 %v802, %v801
    %v816 = vpack.c.b16 %v804, %v803
    %v817 = vpack.c.b16 %v806, %v805
    %v818 = vpack.c.b16 %v808, %v807
    %v819 = vpack.c.b16 %v810, %v809
    %v820 = vpack.c.b16 %v812, %v811
    %829 = vmatpush.bf16.msra.mxu0 %v820
    %830 = vmatpush.bf16.msra.mxu0 %v819
    %831 = vmatpush.bf16.msra.mxu0 %v818
    %832 = vmatpush.bf16.msra.mxu0 %v817
    %833 = vmatpush.bf16.msra.mxu0 %v816
    %834 = vmatpush.bf16.msra.mxu0 %v815
    %835 = vmatpush.bf16.msra.mxu0 %v814
    %836 = vmatpush.bf16.msra.mxu0 %v813
    %837 = vmatmul.bf16.gmra.mxu0 %v760
    %v838 = vpop.f32.mrf.mxu0
    %v839 = vadd.f32 %v779, %v838
    %v840 = vpop.f32.mrf.mxu0
    %841 = vdwg.mxu0
    %842 = vst [vmem:[#allocation11] sm:$0xff] %v839
    %843 = vst [vmem:[#allocation12] sm:$0xff] %v759
    %844 = vst [vmem:[#allocation14] sm:$0xff] %v757
    // Predicated region
    $region54: #{tpu_custom_call.1} parent=1 // pred_check
      _
    $region55: #{tpu_custom_call.1} parent=1 // pred_check_branch
      %846 = sbr.rel (0) target = $region57
    $region56: #{tpu_custom_call.1} parent=1 // pred_region
      %848 = vsyncadd [#allocation4], 0
      %s850 = sshll.u32 [#allocation11], 4
      %s851 = int_to_ptr.vmem [resolvable:$true] %s850
      %s852 = sshll.u32 %s8, 4
      %s853 = int_to_ptr.hbm [resolvable:$true] %s852
      %855 = dma.vmem_to_hbm [thread:$0]  %s851, 128, %s853, [#allocation4]
    $region57: #{tpu_custom_call.1} parent=1 // pred_fallthru
      _
    // Predicated region
    $region58: #{tpu_custom_call.1} parent=1 // pred_check
      _
    $region59: #{tpu_custom_call.1} parent=1 // pred_check_branch
      %857 = sbr.rel (0) target = $region61
    $region60: #{tpu_custom_call.1} parent=1 // pred_region
      %859 = vsyncadd [#allocation13], 0
      %s861 = sshll.u32 [#allocation12], 4
      %s862 = int_to_ptr.vmem [resolvable:$true] %s861
      %s863 = sshll.u32 %s9, 4
      %s864 = int_to_ptr.hbm [resolvable:$true] %s863
      %866 = dma.vmem_to_hbm [thread:$0]  %s862, 128, %s864, [#allocation13]
    $region61: #{tpu_custom_call.1} parent=1 // pred_fallthru
      _
    // Predicated region
    $region62: #{tpu_custom_call.1} parent=1 // pred_check
      _
    $region63: #{tpu_custom_call.1} parent=1 // pred_check_branch
      %868 = sbr.rel (0) target = $region65
    $region64: #{tpu_custom_call.1} parent=1 // pred_region
      %870 = vsyncadd [#allocation13], 0
      %s872 = sshll.u32 [#allocation14], 4
      %s873 = int_to_ptr.vmem [resolvable:$true] %s872
      %s874 = sshll.u32 %s10, 4
      %s875 = int_to_ptr.hbm [resolvable:$true] %s874
      %877 = dma.vmem_to_hbm [thread:$0]  %s873, 128, %s875, [#allocation13]
    $region65: #{tpu_custom_call.1} parent=1 // pred_fallthru
      _
    // Predicated region
    $region66: #{tpu_custom_call.1} parent=1 // pred_check
      _
    $region67: #{tpu_custom_call.1} parent=1 // pred_check_branch
      %879 = sbr.rel (0) target = $region69
    $region68: #{tpu_custom_call.1} parent=1 // pred_region
      %881 = dma.done [#allocation4], 128
    $region69: #{tpu_custom_call.1} parent=1 // pred_fallthru
      _
    // Predicated region
    $region70: #{tpu_custom_call.1} parent=1 // pred_check
      _
    $region71: #{tpu_custom_call.1} parent=1 // pred_check_branch
      %883 = sbr.rel (0) target = $region73
    $region72: #{tpu_custom_call.1} parent=1 // pred_region
      %885 = dma.done [#allocation13], 128
    $region73: #{tpu_custom_call.1} parent=1 // pred_fallthru
      _
    // Predicated region
    $region74: #{tpu_custom_call.1} parent=1 // pred_check
      _
    $region75: #{tpu_custom_call.1} parent=1 // pred_check_branch
      %887 = sbr.rel (0) target = $region77
    $region76: #{tpu_custom_call.1} parent=1 // pred_region
      %889 = dma.done [#allocation13], 128
    $region77: #{tpu_custom_call.1} parent=1 // pred_fallthru
      _
    %890 = vsyncpa [#allocation3], 1
    %891 = vsyncpa [#allocation6], 1
    %892 = vsyncpa [#allocation9], 1
    %893 = vsyncpa [#allocation4], 1
    %894 = vsyncpa [#allocation13], 1

</llo_original>
